<compile_context>
chip_gen: v7x
topology: tpu7x:2x2x1
jax: 0.10.0
libtpu: 0.0.40
codegen_flags: <defaults>
</compile_context>

<pallas_src>
import jax
import jax.numpy as jnp
from jax import lax
from jax.experimental import pallas as pl
from jax.experimental.pallas import tpu as pltpu


LANE = 128   # feature (lane) padding
TILE = 256   # node-count padding and row/col tile size


def _round_up(x, m):
    return ((x + m - 1) // m) * m


def _pad2d(x, rows, cols):
    r, c = x.shape
    return jnp.pad(x, ((0, rows - r), (0, cols - c)))


# ----------------------------------------------------------------------------
# Phase 1: batched per-etype linear transform  Wh_e = X_src @ W_e + b_e
#   x_ref : (tm, D_in)   bf16
#   w_ref : (D_in, D_out) bf16   (already transposed to [in, out])
#   b_ref : (1, D_out)   f32
#   o_ref : (tm, D_out)  bf16
# ----------------------------------------------------------------------------
def _linear_kernel(x_ref, w_ref, b_ref, o_ref):
    wh = jnp.dot(x_ref[...], w_ref[...], preferred_element_type=jnp.float32)
    o_ref[...] = (wh + b_ref[...]).astype(o_ref.dtype)


def batched_linear(x_stack, w_stack, b_stack, *, tm):
    """x_stack [E, N, Din] bf16, w_stack [E, Din, Dout] bf16, b_stack [E, 1, Dout] f32."""
    E, n, d_in = x_stack.shape
    d_out = w_stack.shape[-1]
    return pl.pallas_call(
        _linear_kernel,
        out_shape=jax.ShapeDtypeStruct((E, n, d_out), jnp.bfloat16),
        grid_spec=pltpu.PrefetchScalarGridSpec(
            num_scalar_prefetch=0,
            grid=(E, n // tm),
            in_specs=[
                pl.BlockSpec((None, tm, d_in), lambda e, i: (e, i, 0)),
                pl.BlockSpec((None, d_in, d_out), lambda e, i: (e, 0, 0)),
                pl.BlockSpec((None, 1, d_out), lambda e, i: (e, 0, 0)),
            ],
            out_specs=pl.BlockSpec((None, tm, d_out), lambda e, i: (e, i, 0)),
        ),
        compiler_params=pltpu.CompilerParams(
            dimension_semantics=("parallel", "parallel")),
    )(x_stack, w_stack, b_stack)


# ----------------------------------------------------------------------------
# Phase 2: per-dsttype aggregation with fused cross-etype 'sum'
#   out[dst_tile] = sum_e sum_k  A_e[dst_tile, k_tile] @ Wh_e[k_tile, :]
#   a_ref  : (tm, tk)      bf16 (row-normalized mean adjacency, etype e)
#   wh_ref : (tk, D_out)   bf16
#   o_ref  : (tm, D_out)   f32
#   acc_ref: (tm, D_out)   f32 VMEM scratch, persists across e/k axes
# ----------------------------------------------------------------------------
def _agg_sum_kernel(a_ref, wh_ref, o_ref, acc_ref):
    e = pl.program_id(1)
    k = pl.program_id(2)

    @pl.when((e == 0) & (k == 0))
    def _():
        acc_ref[...] = jnp.zeros_like(acc_ref)

    acc_ref[...] += jnp.dot(a_ref[...], wh_ref[...],
                            preferred_element_type=jnp.float32)

    @pl.when((e == pl.num_programs(1) - 1) & (k == pl.num_programs(2) - 1))
    def _():
        o_ref[...] = acc_ref[...].astype(o_ref.dtype)


def aggregate_sum(a_stack, wh_stack, *, tm, tk):
    """a_stack [E, N_dst, N_src] bf16, wh_stack [E, N_src, Dout] bf16 -> [N_dst, Dout] f32."""
    E, n_dst, n_src = a_stack.shape
    d_out = wh_stack.shape[-1]
    return pl.pallas_call(
        _agg_sum_kernel,
        out_shape=jax.ShapeDtypeStruct((n_dst, d_out), jnp.float32),
        grid_spec=pltpu.PrefetchScalarGridSpec(
            num_scalar_prefetch=0,
            grid=(n_dst // tm, E, n_src // tk),
            in_specs=[
                pl.BlockSpec((None, tm, tk), lambda i, e, k: (e, i, k)),
                pl.BlockSpec((None, tk, d_out), lambda i, e, k: (e, k, 0)),
            ],
            out_specs=pl.BlockSpec((tm, d_out), lambda i, e, k: (i, 0)),
            scratch_shapes=[pltpu.VMEM((tm, d_out), jnp.float32)],
        ),
        compiler_params=pltpu.CompilerParams(
            dimension_semantics=("parallel", "arbitrary", "arbitrary")),
    )(a_stack, wh_stack)


# ----------------------------------------------------------------------------
# Glue: graph structure, padding, cross-etype grouping.
# ----------------------------------------------------------------------------
def build_mean_adjacency(src_idx, dst_idx, n_src, n_dst):
    """A[d, s] = (#edges s->d) / in_degree(d); rows of 0-in-degree nodes are 0."""
    counts = jnp.zeros((n_dst, n_src), jnp.float32).at[dst_idx, src_idx].add(1.0)
    deg = counts.sum(axis=1, keepdims=True)
    return jnp.where(deg > 0, counts / jnp.maximum(deg, 1.0), 0.0)


def hetero_rgcn_layer(canonical_etypes, feat_dict, params, adj_dict, num_nodes):
    """Forward pass of HeteroRGCNLayer using the Pallas kernels."""
    # Only etypes whose srctype has features (matches `if srctype in feat_dict`).
    active = [cet for cet in canonical_etypes if cet[0] in feat_dict]
    if not active:
        return {}

    d_in = next(iter(feat_dict.values())).shape[1]
    d_out = next(iter(params.values()))[0].shape[0]
    d_in_p = _round_up(d_in, LANE)
    d_out_p = _round_up(d_out, LANE)
    n_pad = _round_up(max(num_nodes.values()), TILE)
    tm = min(TILE, n_pad)
    tk = min(TILE, n_pad)

    # ---- Phase 1: all per-etype linears in one pallas_call ----
    x_stack = jnp.stack([
        _pad2d(feat_dict[s], n_pad, d_in_p).astype(jnp.bfloat16)
        for (s, e, d) in active])
    w_stack = jnp.stack([
        _pad2d(params[e][0].T, d_in_p, d_out_p).astype(jnp.bfloat16)   # [in, out]
        for (s, e, d) in active])
    b_stack = jnp.stack([
        _pad2d(params[e][1].reshape(1, -1).astype(jnp.float32), 1, d_out_p)
        for (s, e, d) in active])

    wh_all = batched_linear(x_stack, w_stack, b_stack, tm=tm)   # [E, n_pad, d_out_p] bf16

    # ---- Phase 2: one pallas_call per destination node type (cross-etype sum fused) ----
    out = {}
    dst_types = []
    for (s, e, d) in active:
        if d not in dst_types:
            dst_types.append(d)

    for dtyp in dst_types:
        idxs = [i for i, (s, e, d) in enumerate(active) if d == dtyp]
        a_stack = jnp.stack([
            _pad2d(adj_dict[active[i]], n_pad, n_pad).astype(jnp.bfloat16)
            for i in idxs])
        wh_stack = jnp.stack([wh_all[i] for i in idxs])
        res = aggregate_sum(a_stack, wh_stack, tm=tm, tk=tk)    # [n_pad, d_out_p] f32
        out[dtyp] = res[:num_nodes[dtyp], :d_out]
    return out


if __name__ == "__main__":
    key = jax.random.PRNGKey(0)

    # Small heterogeneous graph: two node types, three edge types.
    IN_SIZE, OUT_SIZE = 32, 32
    num_nodes = {"user": 16, "item": 8}
    canonical_etypes = [
        ("user", "follows", "user"),
        ("user", "buys", "item"),
        ("item", "bought-by", "user"),
    ]
    etypes = [e for (_, e, _) in canonical_etypes]
    num_edges = {"follows": 40, "buys": 24, "bought-by": 24}

    keys = jax.random.split(key, 16)
    feat_dict = {
        "user": jax.random.normal(keys[0], (num_nodes["user"], IN_SIZE), jnp.float32),
        "item": jax.random.normal(keys[1], (num_nodes["item"], IN_SIZE), jnp.float32),
    }

    # Per-etype Linear parameters (PyTorch layout: W [out, in]).
    params = {}
    for i, etype in enumerate(etypes):
        wk, bk = jax.random.split(keys[2 + i])
        bound = 1.0 / jnp.sqrt(IN_SIZE)
        params[etype] = (
            jax.random.uniform(wk, (OUT_SIZE, IN_SIZE), jnp.float32, -bound, bound),
            jax.random.uniform(bk, (OUT_SIZE,), jnp.float32, -bound, bound),
        )

    # Edge lists and mean-aggregation matrices per canonical etype.
    adj_dict = {}
    for i, (srctype, etype, dsttype) in enumerate(canonical_etypes):
        sk, dk = jax.random.split(keys[8 + i])
        ne = num_edges[etype]
        src_idx = jax.random.randint(sk, (ne,), 0, num_nodes[srctype])
        dst_idx = jax.random.randint(dk, (ne,), 0, num_nodes[dsttype])
        adj_dict[(srctype, etype, dsttype)] = build_mean_adjacency(
            src_idx, dst_idx, num_nodes[srctype], num_nodes[dsttype]
        )

    # Run the Pallas-backed layer.
    out = hetero_rgcn_layer(canonical_etypes, feat_dict, params, adj_dict, num_nodes)
    out = {k: jax.block_until_ready(v) for k, v in out.items()}

    # Pure-JAX reference (mirrors the kernel's bf16 operand rounding; f32 accumulation).
    def _bf16_round(x):
        return x.astype(jnp.bfloat16).astype(jnp.float32)

    ref = {}
    for (srctype, etype, dsttype) in canonical_etypes:
        w, b = params[etype]
        wh = _bf16_round(_bf16_round(feat_dict[srctype]) @ _bf16_round(w).T + b)
        contrib = _bf16_round(adj_dict[(srctype, etype, dsttype)]) @ wh
        ref[dsttype] = ref.get(dsttype, 0.0) + contrib

    for ntype in out:
        assert out[ntype].shape == (num_nodes[ntype], OUT_SIZE)
        assert jnp.allclose(out[ntype], ref[ntype], atol=1e-2, rtol=1e-2), ntype

    print("KERNEL_OK")
</pallas_src>

<mosaic_0001>
module attributes {stable_mosaic.version = 11 : i64} {
  func.func @_linear_kernel(%arg0: i32, %arg1: i32, %arg2: memref<1x256x128xbf16, #tpu.memory_space<vmem>>, %arg3: memref<1x128x128xbf16, #tpu.memory_space<vmem>>, %arg4: memref<1x1x128xf32, #tpu.memory_space<vmem>>, %arg5: memref<1x256x128xbf16, #tpu.memory_space<vmem>>) attributes {dimension_semantics = [#tpu.dimension_semantics<parallel>, #tpu.dimension_semantics<parallel>], iteration_bounds = array<i64: 3, 1>, scalar_prefetch = 0 : i64, scratch_operands = 0 : i64, tpu.core_type = #tpu.core_type<tc>, window_params = [{transform_indices = @transform_0, window_bounds = array<i64: 1, 256, 128>}, {transform_indices = @transform_1, window_bounds = array<i64: 1, 128, 128>}, {transform_indices = @transform_2, window_bounds = array<i64: 1, 1, 128>}, {transform_indices = @transform_3, window_bounds = array<i64: 1, 256, 128>}]} {
    %c0 = arith.constant 0 : index
    %c0_0 = arith.constant 0 : index
    %c0_1 = arith.constant 0 : index
    %0 = vector.load %arg2[%c0, %c0_0, %c0_1] : memref<1x256x128xbf16, #tpu.memory_space<vmem>>, vector<1x256x128xbf16>
    %1 = vector.shape_cast %0 : vector<1x256x128xbf16> to vector<256x128xbf16>
    %c0_2 = arith.constant 0 : index
    %c0_3 = arith.constant 0 : index
    %c0_4 = arith.constant 0 : index
    %2 = vector.load %arg3[%c0_2, %c0_3, %c0_4] : memref<1x128x128xbf16, #tpu.memory_space<vmem>>, vector<1x128x128xbf16>
    %3 = vector.shape_cast %2 : vector<1x128x128xbf16> to vector<128x128xbf16>
    %cst = arith.constant dense<0.000000e+00> : vector<256x128xf32>
    %4 = tpu.matmul %1, %3, %cst {dimension_numbers = #tpu.dot_dimension_numbers<[1], [0], [0], [1], [0, 0, 1, 1], [], []>} : vector<256x128xbf16>, vector<128x128xbf16>, vector<256x128xf32> -> vector<256x128xf32>
    %c0_5 = arith.constant 0 : index
    %c0_6 = arith.constant 0 : index
    %c0_7 = arith.constant 0 : index
    %5 = vector.load %arg4[%c0_5, %c0_6, %c0_7] : memref<1x1x128xf32, #tpu.memory_space<vmem>>, vector<1x1x128xf32>
    %6 = vector.shape_cast %5 : vector<1x1x128xf32> to vector<1x128xf32>
    %7 = vector.broadcast %6 : vector<1x128xf32> to vector<256x128xf32>
    %8 = arith.addf %4, %7 : vector<256x128xf32>
    %9 = arith.truncf %8 : vector<256x128xf32> to vector<256x128xbf16>
    %c0_8 = arith.constant 0 : index
    %c0_9 = arith.constant 0 : index
    %c0_10 = arith.constant 0 : index
    %10 = vector.load %arg5[%c0_8, %c0_9, %c0_10] : memref<1x256x128xbf16, #tpu.memory_space<vmem>>, vector<1x256x128xbf16>
    %11 = vector.shape_cast %10 : vector<1x256x128xbf16> to vector<256x128xbf16>
    %12 = vector.shape_cast %9 : vector<256x128xbf16> to vector<1x256x128xbf16>
    tpu.vector_store %arg5[%c0_8, %c0_9, %c0_10], %12 {strides = array<i32>} : memref<1x256x128xbf16, #tpu.memory_space<vmem>>, vector<1x256x128xbf16>,
    return
  }
  func.func @transform_0(%arg0: i32, %arg1: i32) -> (i32, i32, i32) {
    %c0_i32 = arith.constant 0 : i32
    %c0_i32_0 = arith.constant 0 : i32
    return %arg0, %arg1, %c0_i32 : i32, i32, i32
  }
  func.func @transform_1(%arg0: i32, %arg1: i32) -> (i32, i32, i32) {
    %c0_i32 = arith.constant 0 : i32
    %c0_i32_0 = arith.constant 0 : i32
    %c0_i32_1 = arith.constant 0 : i32
    return %arg0, %c0_i32, %c0_i32_0 : i32, i32, i32
  }
  func.func @transform_2(%arg0: i32, %arg1: i32) -> (i32, i32, i32) {
    %c0_i32 = arith.constant 0 : i32
    %c0_i32_0 = arith.constant 0 : i32
    %c0_i32_1 = arith.constant 0 : i32
    return %arg0, %c0_i32, %c0_i32_0 : i32, i32, i32
  }
  func.func @transform_3(%arg0: i32, %arg1: i32) -> (i32, i32, i32) {
    %c0_i32 = arith.constant 0 : i32
    %c0_i32_0 = arith.constant 0 : i32
    return %arg0, %arg1, %c0_i32 : i32, i32, i32
  }
}

</mosaic_0001>

<llo_original>
// kernel: tpu_custom_call.1
$region0: #{tpu_custom_call.1}
  #allocation0 [shape = 'u32[]', space=smem, size = 0x4, offset = 0x4, fixed_abs, tag = 'smem constant byte address 0x4 - core index']
  #allocation1 [shape = 'u32[144,128]{1,0:T(1,128)}', space=vmem, size = 0x12000, scoped, tag = 'internal scratch']
  %s0 = inlined_call_operand.hbm [shape: bf16[3,256,128], index: 0, kind: input, shape index: {}]
  %s1 = inlined_call_operand.hbm [shape: bf16[3,128,128], index: 1, kind: input, shape index: {}]
  %s2 = inlined_call_operand.vmem [shape: f32[3,1,128], index: 2, kind: input, shape index: {}]
  %s3 = inlined_call_operand.hbm [shape: bf16[3,256,128], index: 3, kind: output, shape index: {}]
  %s4 = sld [smem:[#allocation0]]
  $region53: #{tpu_custom_call.1} parent=0
    _
  %s6 = ssub.s32 1, %s4
  %s7 = scalar_select 0, %s6, %s4
  $region1: #{tpu_custom_call.1} parent=0
    #allocation2 [shape = 'u8[131072]{0}', space=vmem, size = 0x20000, scoped, tag = 'input window, operand 0']
    #allocation3 [shape = 's32[2]{0}', space=sflag, size = 0x8, scoped, tag = 'scoped memory for tpu_custom_call.1']
    #allocation4 [shape = 's32[2]{0}', space=sflag, size = 0x8, scoped, tag = 'scoped memory for tpu_custom_call.1']
    #allocation5 [shape = 'u8[65536]{0}', space=vmem, size = 0x10000, scoped, tag = 'input window, operand 1']
    #allocation6 [shape = 's32[2]{0}', space=sflag, size = 0x8, scoped, tag = 'scoped memory for tpu_custom_call.1']
    #allocation7 [shape = 'u8[131072]{0}', space=vmem, size = 0x20000, scoped, tag = 'output window, operand 0']
    %8 = vsyncpa [#allocation3], 0
    %s9 = scalar_lea.sflag [#allocation3], 1
    %10 = vsyncpa %s9, 0
    %11 = vsyncpa [#allocation6], 0
    %s12 = scalar_lea.sflag [#allocation6], 1
    %13 = vsyncpa %s12, 0
    %14 = vsyncpa [#allocation4], 0
    %s15 = scalar_lea.sflag [#allocation4], 1
    %16 = vsyncpa %s15, 0
    loop: start=0, step=1, limit=5
    $region2: #{tpu_custom_call.1} parent=1 // loop_pre_header
      _
    $region3: #{tpu_custom_call.1} parent=1 // loop_header
      %s18 = sphi 0, %s22
      %p19 = scmp.ge.s32.totalorder %s18, 5
      %s25 = sphi 0, %s37
      %s26 = sphi 0, %s33
      %s27 = sphi 0, %s25
      %s28 = sphi 0, %s26
      %s29 = sphi 0, %s27
      %s30 = sphi 0, %s28
      %s42 = sphi 0, %s44
      %s45 = sphi 0, %s42
      %s46 = sphi 0, %s45
      %s62 = sphi 0, %s46
      %s68 = sphi 0, %s70
      %s71 = sphi 0, %s68
      %s72 = sphi 0, %s71
      %s88 = sphi 0, %s72
      %s94 = sphi 0, %s96
      %s97 = sphi 0, %s94
      %s98 = sphi 0, %s97
      %s114 = sphi 0, %s98
      %s122 = sphi 0, %s124
      %s125 = sphi 0, %s122
      %s126 = sphi 0, %s125
      %s142 = sphi 0, %s126
    $region4: #{tpu_custom_call.1} parent=1 // loop_header_branch
      %21 = sbr.rel (%p19) target = $region8
    $region5: #{tpu_custom_call.1} parent=1 // loop_body
      %s23 = ssub.s32 %s18, 1
      %s24 = ssub.s32 %s18, 2
      %s31 = sadd.s32 1, %s26
      %p32 = scmp.ge.s32.totalorder %s31, 1
      %s33 = scalar_select %p32, 0, %s31
      %s34 = sadd.s32 1, %s25
      %s35 = scalar_select %p32, %s34, %s25
      %p36 = scmp.ge.s32.totalorder %s35, 3
      %s37 = scalar_select %p36, 0, %s35
      %s38 = ssub.s32 %s25, %s37
      %s39 = ssub.s32 %s26, %s33
      %s40 = sor.u32 %s38, %s39
      %p41 = scmp.eq.s32.totalorder %s40, 0
      %s43 = sadd.s32 %s42, 1
      %s44 = scalar_select %p41, %s42, %s43
      %p47 = pneg %p41
      %p48 = scmp.eq.s32.totalorder %s18, 2
      %p49 = por %p47, %p48
      %p50 = scmp.ne.s32.totalorder %s42, %s45
      %p51 = scmp.eq.s32.totalorder %s18, 0
      %p52 = por %p50, %p51
      %p53 = scmp.ne.s32.totalorder %s42, %s45
      %p54 = scmp.eq.s32.totalorder %s23, 2
      %p55 = por %p53, %p54
      %p56 = scmp.ne.s32.totalorder %s45, %s46
      %p57 = scmp.eq.s32.totalorder %s23, 0
      %p58 = por %p56, %p57
      %p59 = scmp.ne.s32.totalorder %s45, %s46
      %p60 = scmp.eq.s32.totalorder %s24, 2
      %p61 = por %p59, %p60
      %p63 = scmp.ne.s32.totalorder %s46, %s62
      %p64 = scmp.eq.s32.totalorder %s24, 0
      %p65 = por %p63, %p64
      %s66 = ssub.s32 %s25, %s37
      %p67 = scmp.eq.s32.totalorder %s66, 0
      %s69 = sadd.s32 %s68, 1
      %s70 = scalar_select %p67, %s68, %s69
      %p73 = pneg %p67
      %p74 = scmp.eq.s32.totalorder %s18, 2
      %p75 = por %p73, %p74
      %p76 = scmp.ne.s32.totalorder %s68, %s71
      %p77 = scmp.eq.s32.totalorder %s18, 0
      %p78 = por %p76, %p77
      %p79 = scmp.ne.s32.totalorder %s68, %s71
      %p80 = scmp.eq.s32.totalorder %s23, 2
      %p81 = por %p79, %p80
      %p82 = scmp.ne.s32.totalorder %s71, %s72
      %p83 = scmp.eq.s32.totalorder %s23, 0
      %p84 = por %p82, %p83
      %p85 = scmp.ne.s32.totalorder %s71, %s72
      %p86 = scmp.eq.s32.totalorder %s24, 2
      %p87 = por %p85, %p86
      %p89 = scmp.ne.s32.totalorder %s72, %s88
      %p90 = scmp.eq.s32.totalorder %s24, 0
      %p91 = por %p89, %p90
      %s92 = ssub.s32 %s25, %s37
      %p93 = scmp.eq.s32.totalorder %s92, 0
      %s95 = sadd.s32 %s94, 1
      %s96 = scalar_select %p93, %s94, %s95
      %p99 = pneg %p93
      %p100 = scmp.eq.s32.totalorder %s18, 2
      %p101 = por %p99, %p100
      %p102 = scmp.ne.s32.totalorder %s94, %s97
      %p103 = scmp.eq.s32.totalorder %s18, 0
      %p104 = por %p102, %p103
      %p105 = scmp.ne.s32.totalorder %s94, %s97
      %p106 = scmp.eq.s32.totalorder %s23, 2
      %p107 = por %p105, %p106
      %p108 = scmp.ne.s32.totalorder %s97, %s98
      %p109 = scmp.eq.s32.totalorder %s23, 0
      %p110 = por %p108, %p109
      %p111 = scmp.ne.s32.totalorder %s97, %s98
      %p112 = scmp.eq.s32.totalorder %s24, 2
      %p113 = por %p111, %p112
      %p115 = scmp.ne.s32.totalorder %s98, %s114
      %p116 = scmp.eq.s32.totalorder %s24, 0
      %p117 = por %p115, %p116
      %s118 = ssub.s32 %s25, %s37
      %s119 = ssub.s32 %s26, %s33
      %s120 = sor.u32 %s118, %s119
      %p121 = scmp.eq.s32.totalorder %s120, 0
      %s123 = sadd.s32 %s122, 1
      %s124 = scalar_select %p121, %s122, %s123
      %p127 = pneg %p121
      %p128 = scmp.eq.s32.totalorder %s18, 2
      %p129 = por %p127, %p128
      %p130 = scmp.ne.s32.totalorder %s122, %s125
      %p131 = scmp.eq.s32.totalorder %s18, 0
      %p132 = por %p130, %p131
      %p133 = scmp.ne.s32.totalorder %s122, %s125
      %p134 = scmp.eq.s32.totalorder %s23, 2
      %p135 = por %p133, %p134
      %p136 = scmp.ne.s32.totalorder %s125, %s126
      %p137 = scmp.eq.s32.totalorder %s23, 0
      %p138 = por %p136, %p137
      %p139 = scmp.ne.s32.totalorder %s125, %s126
      %p140 = scmp.eq.s32.totalorder %s24, 2
      %p141 = por %p139, %p140
      %p143 = scmp.ne.s32.totalorder %s126, %s142
      %p144 = scmp.eq.s32.totalorder %s24, 0
      %p145 = por %p143, %p144
      %p146 = scmp.le.s32.totalorder 1, %s18
      %p147 = scmp.lt.s32.totalorder %s18, 4
      %p148 = pnand %p146, %p147
      %p149 = pneg %p148
      // Predicated region
      $region9: #{tpu_custom_call.1} parent=5 // pred_check
        _
      $region10: #{tpu_custom_call.1} parent=5 // pred_check_branch
        %151 = sbr.rel (%p148) target = $region12
      $region11: #{tpu_custom_call.1} parent=5 // pred_region
        %s152 = ssub.s32 %s18, 1
      $region12: #{tpu_custom_call.1} parent=5 // pred_fallthru
        _
      %p153 = scmp.lt.s32.totalorder %s18, 3
      // Predicated region
      $region13: #{tpu_custom_call.1} parent=5 // pred_check
        %p154 = pneg %p153
      $region14: #{tpu_custom_call.1} parent=5 // pred_check_branch
        %156 = sbr.rel (%p154) target = $region16
      $region15: #{tpu_custom_call.1} parent=5 // pred_region
        // Predicated region
        $region17: #{tpu_custom_call.1} parent=15 // pred_check
          %p157 = pneg %p52
        $region18: #{tpu_custom_call.1} parent=15 // pred_check_branch
          %159 = sbr.rel (%p157) target = $region20
        $region19: #{tpu_custom_call.1} parent=15 // pred_region
          %s160 = sand.u32 %s42, 1
          %s161 = scalar_lea.sflag [#allocation3], %s160
          %s162 = sand.u32 %s42, 1
          %s163 = smul.addr %s162, 128
          %s164 = scalar_lea.vmem [#allocation2], %s163
          %s165 = smul.u32 32, %s26
          %s167 = ssub.s32 2048, 2048
          %168 = vsyncadd %s161, %s167
          %s169 = smul.addr %s25, 32
          %s170 = sadd.s32 %s165, %s169
          %s171 = smul.addr %s170, 64
          %s172 = scalar_lea.hbm %s0, %s171
          %s173 = sshll.u32 %s164, 4
          %s174 = int_to_ptr.vmem [resolvable:$true] %s173
          %179 = dma.hbm_to_vmem [thread:$0]  %s172, 2048, %s174, %s161, 64, 64, 4
        $region20: #{tpu_custom_call.1} parent=15 // pred_fallthru
          _
        // Predicated region
        $region21: #{tpu_custom_call.1} parent=15 // pred_check
          %p180 = pneg %p78
        $region22: #{tpu_custom_call.1} parent=15 // pred_check_branch
          %182 = sbr.rel (%p180) target = $region24
        $region23: #{tpu_custom_call.1} parent=15 // pred_region
          %s183 = sand.u32 %s68, 1
          %s184 = scalar_lea.sflag [#allocation6], %s183
          %s185 = sand.u32 %s68, 1
          %s186 = smul.addr %s185, 64
          %s187 = scalar_lea.vmem [#allocation5], %s186
          %s189 = ssub.s32 1024, 1024
          %190 = vsyncadd %s184, %s189
          %s191 = smul.addr %s25, 16
          %s192 = smul.addr %s191, 64
          %s193 = scalar_lea.hbm %s1, %s192
          %s194 = sshll.u32 %s187, 4
          %s195 = int_to_ptr.vmem [resolvable:$true] %s194
          %200 = dma.hbm_to_vmem [thread:$0]  %s193, 1024, %s195, %s184, 64, 64, 4
        $region24: #{tpu_custom_call.1} parent=15 // pred_fallthru
          _
        // Predicated region
        $region25: #{tpu_custom_call.1} parent=15 // pred_check
          %p201 = pneg %p104
        $region26: #{tpu_custom_call.1} parent=15 // pred_check_branch
          %203 = sbr.rel (%p201) target = $region28
        $region27: #{tpu_custom_call.1} parent=15 // pred_region
          %p204 = scmp.lt.s32.totalorder %s25, 2
          %s205 = scalar_select %p204, %s25, 2
          %s206 = scalar_lea.vmem %s2, %s205
        $region28: #{tpu_custom_call.1} parent=15 // pred_fallthru
          _
      $region16: #{tpu_custom_call.1} parent=5 // pred_fallthru
        _
      %p207 = scmp.le.s32.totalorder 1, %s18
      %p208 = scmp.lt.s32.totalorder %s18, 4
      %p209 = pnand %p207, %p208
      %p210 = pneg %p209
      // Predicated region
      $region29: #{tpu_custom_call.1} parent=5 // pred_check
        _
      $region30: #{tpu_custom_call.1} parent=5 // pred_check_branch
        %212 = sbr.rel (%p209) target = $region32
      $region31: #{tpu_custom_call.1} parent=5 // pred_region
        %s213 = ssub.s32 %s18, 1
        %s214 = sand.u32 %s45, 1
        %s215 = scalar_lea.sflag [#allocation3], %s214
        %s216 = sand.u32 %s45, 1
        %s217 = smul.addr %s216, 128
        %s218 = scalar_lea.vmem [#allocation2], %s217
        // Predicated region
        $region33: #{tpu_custom_call.1} parent=31 // pred_check
          %p219 = pneg %p58
        $region34: #{tpu_custom_call.1} parent=31 // pred_check_branch
          %221 = sbr.rel (%p219) target = $region36
        $region35: #{tpu_custom_call.1} parent=31 // pred_region
          %222 = dma.done %s215, 2048
        $region36: #{tpu_custom_call.1} parent=31 // pred_fallthru
          _
        %s223 = sand.u32 %s71, 1
        %s224 = scalar_lea.sflag [#allocation6], %s223
        %s225 = sand.u32 %s71, 1
        %s226 = smul.addr %s225, 64
        %s227 = scalar_lea.vmem [#allocation5], %s226
        // Predicated region
        $region37: #{tpu_custom_call.1} parent=31 // pred_check
          %p228 = pneg %p84
        $region38: #{tpu_custom_call.1} parent=31 // pred_check_branch
          %230 = sbr.rel (%p228) target = $region40
        $region39: #{tpu_custom_call.1} parent=31 // pred_region
          %231 = dma.done %s224, 1024
        $region40: #{tpu_custom_call.1} parent=31 // pred_fallthru
          _
        %s232 = sand.u32 %s45, 1
        %s233 = scalar_lea.sflag [#allocation3], %s232
        %s234 = sand.u32 %s45, 1
        %s235 = smul.addr %s234, 128
        %s236 = scalar_lea.vmem [#allocation2], %s235
        %p237 = pneg %p58
        %p238 = pneg %p55
        %s239 = sand.u32 %s71, 1
        %s240 = scalar_lea.sflag [#allocation6], %s239
        %s241 = sand.u32 %s71, 1
        %s242 = smul.addr %s241, 64
        %s243 = scalar_lea.vmem [#allocation5], %s242
        %p244 = pneg %p84
        %p245 = pneg %p81
        %p246 = scmp.lt.s32.totalorder %s27, 2
        %s247 = scalar_select %p246, %s27, 2
        %s248 = scalar_lea.vmem %s2, %s247
        %p249 = pneg %p110
        %p250 = pneg %p107
        %p251 = pneg %p138
        %p252 = pneg %p135
        %s253 = sand.u32 %s125, 1
        %s254 = scalar_lea.sflag [#allocation4], %s253
        %s255 = sand.u32 %s125, 1
        %s256 = smul.addr %s255, 128
        %s257 = scalar_lea.vmem [#allocation7], %s256
        %s258 = smul.u32 32, %s28
        %p259 = scmp.lt.s32.totalorder %s27, 2
        %s260 = scalar_select %p259, %s27, 2
        %s261 = scalar_lea.vmem %s2, %s260
        %s262 = smul.u32 32, %s28
        %v264 = vld [vmem:[%s218] sm:$0xf]
        %v265 = vld [vmem:[%s218 + $0x4] sm:$0xf]
        %v266 = vld [vmem:[%s218 + $0x8] sm:$0xf]
        %v267 = vld [vmem:[%s218 + $0xc] sm:$0xf]
        %v268 = vld [vmem:[%s218 + $0x10] sm:$0xf]
        %v269 = vld [vmem:[%s218 + $0x14] sm:$0xf]
        %v270 = vld [vmem:[%s218 + $0x18] sm:$0xf]
        %v271 = vld [vmem:[%s218 + $0x1c] sm:$0xf]
        %v272 = vld [vmem:[%s218 + $0x20] sm:$0xf]
        %v273 = vld [vmem:[%s218 + $0x24] sm:$0xf]
        %v274 = vld [vmem:[%s218 + $0x28] sm:$0xf]
        %v275 = vld [vmem:[%s218 + $0x2c] sm:$0xf]
        %v276 = vld [vmem:[%s218 + $0x30] sm:$0xf]
        %v277 = vld [vmem:[%s218 + $0x34] sm:$0xf]
        %v278 = vld [vmem:[%s218 + $0x38] sm:$0xf]
        %v279 = vld [vmem:[%s218 + $0x3c] sm:$0xf]
        %v280 = vld [vmem:[%s218 + $0x40] sm:$0xf]
        %v281 = vld [vmem:[%s218 + $0x44] sm:$0xf]
        %v282 = vld [vmem:[%s218 + $0x48] sm:$0xf]
        %v283 = vld [vmem:[%s218 + $0x4c] sm:$0xf]
        %v284 = vld [vmem:[%s218 + $0x50] sm:$0xf]
        %v285 = vld [vmem:[%s218 + $0x54] sm:$0xf]
        %v286 = vld [vmem:[%s218 + $0x58] sm:$0xf]
        %v287 = vld [vmem:[%s218 + $0x5c] sm:$0xf]
        %v288 = vld [vmem:[%s218 + $0x60] sm:$0xf]
        %v289 = vld [vmem:[%s218 + $0x64] sm:$0xf]
        %v290 = vld [vmem:[%s218 + $0x68] sm:$0xf]
        %v291 = vld [vmem:[%s218 + $0x6c] sm:$0xf]
        %v292 = vld [vmem:[%s218 + $0x70] sm:$0xf]
        %v293 = vld [vmem:[%s218 + $0x74] sm:$0xf]
        %v294 = vld [vmem:[%s218 + $0x78] sm:$0xf]
        %v295 = vld [vmem:[%s218 + $0x7c] sm:$0xf]
        %v296 = vld [vmem:[%s227] sm:$0xf]
        %v297 = vld [vmem:[%s227 + $0x4] sm:$0xf]
        %v298 = vld [vmem:[%s227 + $0x8] sm:$0xf]
        %v299 = vld [vmem:[%s227 + $0xc] sm:$0xf]
        %v300 = vld [vmem:[%s227 + $0x10] sm:$0xf]
        %v301 = vld [vmem:[%s227 + $0x14] sm:$0xf]
        %v302 = vld [vmem:[%s227 + $0x18] sm:$0xf]
        %v303 = vld [vmem:[%s227 + $0x1c] sm:$0xf]
        %v304 = vld [vmem:[%s227 + $0x20] sm:$0xf]
        %v305 = vld [vmem:[%s227 + $0x24] sm:$0xf]
        %v306 = vld [vmem:[%s227 + $0x28] sm:$0xf]
        %v307 = vld [vmem:[%s227 + $0x2c] sm:$0xf]
        %v308 = vld [vmem:[%s227 + $0x30] sm:$0xf]
        %v309 = vld [vmem:[%s227 + $0x34] sm:$0xf]
        %v310 = vld [vmem:[%s227 + $0x38] sm:$0xf]
        %v311 = vld [vmem:[%s227 + $0x3c] sm:$0xf]
        %v312 = vld [vmem:[%s261] sm:$0x1]
        %v314 = vlaneseq
        %v315 = vshrl.u32 %v314, 7
        %v316 = vsub.s32 0, %v315
        %v317 = vrot.slane %v312, %v316
        %v351 = vunpack.c.l.b16 %v264
        %v352 = vunpack.c.l.b16 %v265
        %v353 = vunpack.c.l.b16 %v266
        %v354 = vunpack.c.l.b16 %v267
        %v355 = vunpack.c.l.b16 %v268
        %v356 = vunpack.c.l.b16 %v269
        %v357 = vunpack.c.l.b16 %v270
        %v358 = vunpack.c.l.b16 %v271
        %v359 = vunpack.c.l.b16 %v272
        %v360 = vunpack.c.l.b16 %v273
        %v361 = vunpack.c.l.b16 %v274
        %v362 = vunpack.c.l.b16 %v275
        %v363 = vunpack.c.l.b16 %v276
        %v364 = vunpack.c.l.b16 %v277
        %v365 = vunpack.c.l.b16 %v278
        %v366 = vunpack.c.l.b16 %v279
        %v367 = vunpack.c.l.b16 %v280
        %v368 = vunpack.c.l.b16 %v281
        %v369 = vunpack.c.l.b16 %v282
        %v370 = vunpack.c.l.b16 %v283
        %v371 = vunpack.c.l.b16 %v284
        %v372 = vunpack.c.l.b16 %v285
        %v373 = vunpack.c.l.b16 %v286
        %v374 = vunpack.c.l.b16 %v287
        %v375 = vunpack.c.l.b16 %v288
        %v376 = vunpack.c.l.b16 %v289
        %v377 = vunpack.c.l.b16 %v290
        %v378 = vunpack.c.l.b16 %v291
        %v379 = vunpack.c.l.b16 %v292
        %v380 = vunpack.c.l.b16 %v293
        %v381 = vunpack.c.l.b16 %v294
        %v382 = vunpack.c.l.b16 %v295
        %v383 = vpack.c.b16 %v352, %v351
        %v384 = vpack.c.b16 %v354, %v353
        %v385 = vpack.c.b16 %v356, %v355
        %v386 = vpack.c.b16 %v358, %v357
        %v387 = vpack.c.b16 %v360, %v359
        %v388 = vpack.c.b16 %v362, %v361
        %v389 = vpack.c.b16 %v364, %v363
        %v390 = vpack.c.b16 %v366, %v365
        %v391 = vpack.c.b16 %v368, %v367
        %v392 = vpack.c.b16 %v370, %v369
        %v393 = vpack.c.b16 %v372, %v371
        %v394 = vpack.c.b16 %v374, %v373
        %v395 = vpack.c.b16 %v376, %v375
        %v396 = vpack.c.b16 %v378, %v377
        %v397 = vpack.c.b16 %v380, %v379
        %v398 = vpack.c.b16 %v382, %v381
        %v431 = vunpack.c.l.b16 %v296
        %v432 = vunpack.c.l.b16 %v297
        %v433 = vunpack.c.l.b16 %v298
        %v434 = vunpack.c.l.b16 %v299
        %v435 = vunpack.c.l.b16 %v300
        %v436 = vunpack.c.l.b16 %v301
        %v437 = vunpack.c.l.b16 %v302
        %v438 = vunpack.c.l.b16 %v303
        %v439 = vunpack.c.l.b16 %v304
        %v440 = vunpack.c.l.b16 %v305
        %v441 = vunpack.c.l.b16 %v306
        %v442 = vunpack.c.l.b16 %v307
        %v443 = vunpack.c.l.b16 %v308
        %v444 = vunpack.c.l.b16 %v309
        %v445 = vunpack.c.l.b16 %v310
        %v446 = vunpack.c.l.b16 %v311
        %v447 = vpack.c.b16 %v432, %v431
        %v448 = vpack.c.b16 %v434, %v433
        %v449 = vpack.c.b16 %v436, %v435
        %v450 = vpack.c.b16 %v438, %v437
        %v451 = vpack.c.b16 %v440, %v439
        %v452 = vpack.c.b16 %v442, %v441
        %v453 = vpack.c.b16 %v444, %v443
        %v454 = vpack.c.b16 %v446, %v445
        %463 = vmatprep.subr.bf16.mxu0 0
        %464 = vmatpush1.bf16.msra.mxu0 %v447
        %465 = vmatprep.subr.bf16.mxu0 0
        %466 = vmatpush1.bf16.msra.mxu0 %v448
        %467 = vmatprep.subr.bf16.mxu0 0
        %468 = vmatpush1.bf16.msra.mxu0 %v449
        %469 = vmatprep.subr.bf16.mxu0 0
        %470 = vmatpush1.bf16.msra.mxu0 %v450
        %471 = vmatprep.subr.bf16.mxu0 0
        %472 = vmatpush1.bf16.msra.mxu0 %v451
        %473 = vmatprep.subr.bf16.mxu0 0
        %474 = vmatpush1.bf16.msra.mxu0 %v452
        %475 = vmatprep.subr.bf16.mxu0 0
        %476 = vmatpush1.bf16.msra.mxu0 %v453
        %477 = vmatprep.subr.bf16.mxu0 0
        %478 = vmatpush1.bf16.msra.mxu0 %v454
        %479 = vmatprep.subr.bf16.mxu0 0
        %480 = vmatpush1.bf16.msra.mxu0 0
        %481 = vmatprep.subr.bf16.mxu0 0
        %482 = vmatpush1.bf16.msra.mxu0 0
        %483 = vmatprep.subr.bf16.mxu0 0
        %484 = vmatpush1.bf16.msra.mxu0 0
        %485 = vmatprep.subr.bf16.mxu0 0
        %486 = vmatpush1.bf16.msra.mxu0 0
        %487 = vmatprep.subr.bf16.mxu0 0
        %488 = vmatpush1.bf16.msra.mxu0 0
        %489 = vmatprep.subr.bf16.mxu0 0
        %490 = vmatpush1.bf16.msra.mxu0 0
        %491 = vmatprep.subr.bf16.mxu0 0
        %492 = vmatpush1.bf16.msra.mxu0 0
        %493 = vmatprep.subr.bf16.mxu0 0
        %494 = vmatpush1.bf16.msra.mxu0 0
        %495 = vmatprep.mubr.bf16.mxu0 0
        %496 = vmatmul.mubr.bf16.gmra.mrb[0].mxu0 %v383
        %v497 = vpop.f32.mrb[0].mxu0
        %v498 = vadd.f32 %v317, %v497
        %v499 = vpop.f32.mrb[0].mxu0
        %v500 = vpop.f32.mrb[0].mxu0
        %v501 = vadd.f32 %v317, %v500
        %v502 = vpop.f32.mrb[0].mxu0
        %503 = vmatprep.mubr.bf16.mxu0 0
        %504 = vmatmul.mubr.bf16.gmra.mrb[0].mxu0 %v384
        %v505 = vpop.f32.mrb[0].mxu0
        %v506 = vadd.f32 %v317, %v505
        %v507 = vpop.f32.mrb[0].mxu0
        %v508 = vpop.f32.mrb[0].mxu0
        %v509 = vadd.f32 %v317, %v508
        %v510 = vpop.f32.mrb[0].mxu0
        %511 = vmatprep.mubr.bf16.mxu0 0
        %512 = vmatmul.mubr.bf16.gmra.mrb[0].mxu0 %v385
        %v513 = vpop.f32.mrb[0].mxu0
        %v514 = vadd.f32 %v317, %v513
        %v515 = vpop.f32.mrb[0].mxu0
        %v516 = vpop.f32.mrb[0].mxu0
        %v517 = vadd.f32 %v317, %v516
        %v518 = vpop.f32.mrb[0].mxu0
        %519 = vmatprep.mubr.bf16.mxu0 0
        %520 = vmatmul.mubr.bf16.gmra.mrb[0].mxu0 %v386
        %v521 = vpop.f32.mrb[0].mxu0
        %v522 = vadd.f32 %v317, %v521
        %v523 = vpop.f32.mrb[0].mxu0
        %v524 = vpop.f32.mrb[0].mxu0
        %v525 = vadd.f32 %v317, %v524
        %v526 = vpop.f32.mrb[0].mxu0
        %527 = vmatprep.mubr.bf16.mxu0 0
        %528 = vmatmul.mubr.bf16.gmra.mrb[0].mxu0 %v387
        %v529 = vpop.f32.mrb[0].mxu0
        %v530 = vadd.f32 %v317, %v529
        %v531 = vpop.f32.mrb[0].mxu0
        %v532 = vpop.f32.mrb[0].mxu0
        %v533 = vadd.f32 %v317, %v532
        %v534 = vpop.f32.mrb[0].mxu0
        %535 = vmatprep.mubr.bf16.mxu0 0
        %536 = vmatmul.mubr.bf16.gmra.mrb[0].mxu0 %v388
        %v537 = vpop.f32.mrb[0].mxu0
        %v538 = vadd.f32 %v317, %v537
        %v539 = vpop.f32.mrb[0].mxu0
        %v540 = vpop.f32.mrb[0].mxu0
        %v541 = vadd.f32 %v317, %v540
        %v542 = vpop.f32.mrb[0].mxu0
        %543 = vmatprep.mubr.bf16.mxu0 0
        %544 = vmatmul.mubr.bf16.gmra.mrb[0].mxu0 %v389
        %v545 = vpop.f32.mrb[0].mxu0
        %v546 = vadd.f32 %v317, %v545
        %v547 = vpop.f32.mrb[0].mxu0
        %v548 = vpop.f32.mrb[0].mxu0
        %v549 = vadd.f32 %v317, %v548
        %v550 = vpop.f32.mrb[0].mxu0
        %551 = vmatprep.mubr.bf16.mxu0 0
        %552 = vmatmul.mubr.bf16.gmra.mrb[0].mxu0 %v390
        %v553 = vpop.f32.mrb[0].mxu0
        %v554 = vadd.f32 %v317, %v553
        %v555 = vpop.f32.mrb[0].mxu0
        %v556 = vpop.f32.mrb[0].mxu0
        %v557 = vadd.f32 %v317, %v556
        %v558 = vpop.f32.mrb[0].mxu0
        %559 = vmatprep.mubr.bf16.mxu0 0
        %560 = vmatmul.mubr.bf16.gmra.mrb[0].mxu0 %v391
        %v561 = vpop.f32.mrb[0].mxu0
        %v562 = vadd.f32 %v317, %v561
        %v563 = vpop.f32.mrb[0].mxu0
        %v564 = vpop.f32.mrb[0].mxu0
        %v565 = vadd.f32 %v317, %v564
        %v566 = vpop.f32.mrb[0].mxu0
        %567 = vmatprep.mubr.bf16.mxu0 0
        %568 = vmatmul.mubr.bf16.gmra.mrb[0].mxu0 %v392
        %v569 = vpop.f32.mrb[0].mxu0
        %v570 = vadd.f32 %v317, %v569
        %v571 = vpop.f32.mrb[0].mxu0
        %v572 = vpop.f32.mrb[0].mxu0
        %v573 = vadd.f32 %v317, %v572
        %v574 = vpop.f32.mrb[0].mxu0
        %575 = vmatprep.mubr.bf16.mxu0 0
        %576 = vmatmul.mubr.bf16.gmra.mrb[0].mxu0 %v393
        %v577 = vpop.f32.mrb[0].mxu0
        %v578 = vadd.f32 %v317, %v577
        %v579 = vpop.f32.mrb[0].mxu0
        %v580 = vpop.f32.mrb[0].mxu0
        %v581 = vadd.f32 %v317, %v580
        %v582 = vpop.f32.mrb[0].mxu0
        %583 = vmatprep.mubr.bf16.mxu0 0
        %584 = vmatmul.mubr.bf16.gmra.mrb[0].mxu0 %v394
        %v585 = vpop.f32.mrb[0].mxu0
        %v586 = vadd.f32 %v317, %v585
        %v587 = vpop.f32.mrb[0].mxu0
        %v588 = vpop.f32.mrb[0].mxu0
        %v589 = vadd.f32 %v317, %v588
        %v590 = vpop.f32.mrb[0].mxu0
        %591 = vmatprep.mubr.bf16.mxu0 0
        %592 = vmatmul.mubr.bf16.gmra.mrb[0].mxu0 %v395
        %v593 = vpop.f32.mrb[0].mxu0
        %v594 = vadd.f32 %v317, %v593
        %v595 = vpop.f32.mrb[0].mxu0
        %v596 = vpop.f32.mrb[0].mxu0
        %v597 = vadd.f32 %v317, %v596
        %v598 = vpop.f32.mrb[0].mxu0
        %599 = vmatprep.mubr.bf16.mxu0 0
        %600 = vmatmul.mubr.bf16.gmra.mrb[0].mxu0 %v396
        %v601 = vpop.f32.mrb[0].mxu0
        %v602 = vadd.f32 %v317, %v601
        %v603 = vpop.f32.mrb[0].mxu0
        %v604 = vpop.f32.mrb[0].mxu0
        %v605 = vadd.f32 %v317, %v604
        %v606 = vpop.f32.mrb[0].mxu0
        %607 = vmatprep.mubr.bf16.mxu0 0
        %608 = vmatmul.mubr.bf16.gmra.mrb[0].mxu0 %v397
        %v609 = vpop.f32.mrb[0].mxu0
        %v610 = vadd.f32 %v317, %v609
        %v611 = vpop.f32.mrb[0].mxu0
        %v612 = vpop.f32.mrb[0].mxu0
        %v613 = vadd.f32 %v317, %v612
        %v614 = vpop.f32.mrb[0].mxu0
        %615 = vmatprep.mubr.bf16.mxu0 0
        %616 = vmatmul.mubr.bf16.gmra.mrb[0].mxu0 %v398
        %v617 = vpop.f32.mrb[0].mxu0
        %v618 = vadd.f32 %v317, %v617
        %v619 = vpop.f32.mrb[0].mxu0
        %v620 = vpop.f32.mrb[0].mxu0
        %v621 = vadd.f32 %v317, %v620
        %v622 = vpop.f32.mrb[0].mxu0
        %623 = vdwg.mxu0
        %v624 = vpack.c.bf16 %v501, %v498
        %v625 = vpack.c.bf16 %v509, %v506
        %v626 = vpack.c.bf16 %v517, %v514
        %v627 = vpack.c.bf16 %v525, %v522
        %v628 = vpack.c.bf16 %v533, %v530
        %v629 = vpack.c.bf16 %v541, %v538
        %v630 = vpack.c.bf16 %v549, %v546
        %v631 = vpack.c.bf16 %v557, %v554
        %v632 = vpack.c.bf16 %v565, %v562
        %v633 = vpack.c.bf16 %v573, %v570
        %v634 = vpack.c.bf16 %v581, %v578
        %v635 = vpack.c.bf16 %v589, %v586
        %v636 = vpack.c.bf16 %v597, %v594
        %v637 = vpack.c.bf16 %v605, %v602
        %v638 = vpack.c.bf16 %v613, %v610
        %v639 = vpack.c.bf16 %v621, %v618
        %v656 = vunpack.c.l.b16 %v624
        %v657 = vunpack.c.h.b16 %v624
        %v658 = vunpack.c.l.b16 %v625
        %v659 = vunpack.c.h.b16 %v625
        %v660 = vunpack.c.l.b16 %v626
        %v661 = vunpack.c.h.b16 %v626
        %v662 = vunpack.c.l.b16 %v627
        %v663 = vunpack.c.h.b16 %v627
        %v664 = vunpack.c.l.b16 %v628
        %v665 = vunpack.c.h.b16 %v628
        %v666 = vunpack.c.l.b16 %v629
        %v667 = vunpack.c.h.b16 %v629
        %v668 = vunpack.c.l.b16 %v630
        %v669 = vunpack.c.h.b16 %v630
        %v670 = vunpack.c.l.b16 %v631
        %v671 = vunpack.c.h.b16 %v631
        %v672 = vunpack.c.l.b16 %v632
        %v673 = vunpack.c.h.b16 %v632
        %v674 = vunpack.c.l.b16 %v633
        %v675 = vunpack.c.h.b16 %v633
        %v676 = vunpack.c.l.b16 %v634
        %v677 = vunpack.c.h.b16 %v634
        %v678 = vunpack.c.l.b16 %v635
        %v679 = vunpack.c.h.b16 %v635
        %v680 = vunpack.c.l.b16 %v636
        %v681 = vunpack.c.h.b16 %v636
        %v682 = vunpack.c.l.b16 %v637
        %v683 = vunpack.c.h.b16 %v637
        %v684 = vunpack.c.l.b16 %v638
        %v685 = vunpack.c.h.b16 %v638
        %v686 = vunpack.c.l.b16 %v639
        %v687 = vunpack.c.h.b16 %v639
        %v688 = vpack.c.b16 %v656, %v656
        %v689 = vpack.c.b16 %v657, %v657
        %v690 = vpack.c.b16 %v658, %v658
        %v691 = vpack.c.b16 %v659, %v659
        %v692 = vpack.c.b16 %v660, %v660
        %v693 = vpack.c.b16 %v661, %v661
        %v694 = vpack.c.b16 %v662, %v662
        %v695 = vpack.c.b16 %v663, %v663
        %v696 = vpack.c.b16 %v664, %v664
        %v697 = vpack.c.b16 %v665, %v665
        %v698 = vpack.c.b16 %v666, %v666
        %v699 = vpack.c.b16 %v667, %v667
        %v700 = vpack.c.b16 %v668, %v668
        %v701 = vpack.c.b16 %v669, %v669
        %v702 = vpack.c.b16 %v670, %v670
        %v703 = vpack.c.b16 %v671, %v671
        %v704 = vpack.c.b16 %v672, %v672
        %v705 = vpack.c.b16 %v673, %v673
        %v706 = vpack.c.b16 %v674, %v674
        %v707 = vpack.c.b16 %v675, %v675
        %v708 = vpack.c.b16 %v676, %v676
        %v709 = vpack.c.b16 %v677, %v677
        %v710 = vpack.c.b16 %v678, %v678
        %v711 = vpack.c.b16 %v679, %v679
        %v712 = vpack.c.b16 %v680, %v680
        %v713 = vpack.c.b16 %v681, %v681
        %v714 = vpack.c.b16 %v682, %v682
        %v715 = vpack.c.b16 %v683, %v683
        %v716 = vpack.c.b16 %v684, %v684
        %v717 = vpack.c.b16 %v685, %v685
        %v718 = vpack.c.b16 %v686, %v686
        %v719 = vpack.c.b16 %v687, %v687
        %752 = vst [vmem:[%s257] sm:$0xf] %v688
        %753 = vst [vmem:[%s257 + $0x4] sm:$0xf] %v689
        %754 = vst [vmem:[%s257 + $0x8] sm:$0xf] %v690
        %755 = vst [vmem:[%s257 + $0xc] sm:$0xf] %v691
        %756 = vst [vmem:[%s257 + $0x10] sm:$0xf] %v692
        %757 = vst [vmem:[%s257 + $0x14] sm:$0xf] %v693
        %758 = vst [vmem:[%s257 + $0x18] sm:$0xf] %v694
        %759 = vst [vmem:[%s257 + $0x1c] sm:$0xf] %v695
        %760 = vst [vmem:[%s257 + $0x20] sm:$0xf] %v696
        %761 = vst [vmem:[%s257 + $0x24] sm:$0xf] %v697
        %762 = vst [vmem:[%s257 + $0x28] sm:$0xf] %v698
        %763 = vst [vmem:[%s257 + $0x2c] sm:$0xf] %v699
        %764 = vst [vmem:[%s257 + $0x30] sm:$0xf] %v700
        %765 = vst [vmem:[%s257 + $0x34] sm:$0xf] %v701
        %766 = vst [vmem:[%s257 + $0x38] sm:$0xf] %v702
        %767 = vst [vmem:[%s257 + $0x3c] sm:$0xf] %v703
        %768 = vst [vmem:[%s257 + $0x40] sm:$0xf] %v704
        %769 = vst [vmem:[%s257 + $0x44] sm:$0xf] %v705
        %770 = vst [vmem:[%s257 + $0x48] sm:$0xf] %v706
        %771 = vst [vmem:[%s257 + $0x4c] sm:$0xf] %v707
        %772 = vst [vmem:[%s257 + $0x50] sm:$0xf] %v708
        %773 = vst [vmem:[%s257 + $0x54] sm:$0xf] %v709
        %774 = vst [vmem:[%s257 + $0x58] sm:$0xf] %v710
        %775 = vst [vmem:[%s257 + $0x5c] sm:$0xf] %v711
        %776 = vst [vmem:[%s257 + $0x60] sm:$0xf] %v712
        %777 = vst [vmem:[%s257 + $0x64] sm:$0xf] %v713
        %778 = vst [vmem:[%s257 + $0x68] sm:$0xf] %v714
        %779 = vst [vmem:[%s257 + $0x6c] sm:$0xf] %v715
        %780 = vst [vmem:[%s257 + $0x70] sm:$0xf] %v716
        %781 = vst [vmem:[%s257 + $0x74] sm:$0xf] %v717
        %782 = vst [vmem:[%s257 + $0x78] sm:$0xf] %v718
        %783 = vst [vmem:[%s257 + $0x7c] sm:$0xf] %v719
        %s784 = sand.u32 %s125, 1
        %s785 = scalar_lea.sflag [#allocation4], %s784
        %s786 = sand.u32 %s125, 1
        %s787 = smul.addr %s786, 128
        %s788 = scalar_lea.vmem [#allocation7], %s787
        // Predicated region
        $region41: #{tpu_custom_call.1} parent=31 // pred_check
          %p789 = pneg %p135
        $region42: #{tpu_custom_call.1} parent=31 // pred_check_branch
          %791 = sbr.rel (%p789) target = $region44
        $region43: #{tpu_custom_call.1} parent=31 // pred_region
          %s792 = smul.u32 32, %s28
          %s794 = ssub.s32 2048, 2048
          %795 = vsyncadd %s785, %s794
          %s796 = smul.addr %s27, 32
          %s797 = sadd.s32 %s792, %s796
          %s798 = smul.addr %s797, 64
          %s799 = scalar_lea.hbm %s3, %s798
          %s800 = sshll.u32 %s788, 4
          %s801 = int_to_ptr.vmem [resolvable:$true] %s800
          %806 = dma.vmem_to_hbm [thread:$0]  %s801, 2048, %s799, %s785, 64, 64, 4
        $region44: #{tpu_custom_call.1} parent=31 // pred_fallthru
          _
      $region32: #{tpu_custom_call.1} parent=5 // pred_fallthru
        _
      %p807 = scmp.le.s32.totalorder 2, %s18
      // Predicated region
      $region45: #{tpu_custom_call.1} parent=5 // pred_check
        %p808 = pneg %p807
      $region46: #{tpu_custom_call.1} parent=5 // pred_check_branch
        %810 = sbr.rel (%p808) target = $region48
      $region47: #{tpu_custom_call.1} parent=5 // pred_region
        %s811 = ssub.s32 %s18, 2
        // Predicated region
        $region49: #{tpu_custom_call.1} parent=47 // pred_check
          %p812 = pneg %p141
        $region50: #{tpu_custom_call.1} parent=47 // pred_check_branch
          %814 = sbr.rel (%p812) target = $region52
        $region51: #{tpu_custom_call.1} parent=47 // pred_region
          %s815 = sand.u32 %s126, 1
          %s816 = scalar_lea.sflag [#allocation4], %s815
          %s817 = sand.u32 %s126, 1
          %s818 = smul.addr %s817, 128
          %s819 = scalar_lea.vmem [#allocation7], %s818
          %820 = dma.done %s816, 2048
        $region52: #{tpu_custom_call.1} parent=47 // pred_fallthru
          _
      $region48: #{tpu_custom_call.1} parent=5 // pred_fallthru
        _
    $region6: #{tpu_custom_call.1} parent=1 // loop_footer
      %s22 = sadd.s32 1, %s18
    $region7: #{tpu_custom_call.1} parent=1 // loop_footer_branch
      %17 = sbr.rel target = $region3
    $region8: #{tpu_custom_call.1} parent=1 // loop_exit
      _
    %821 = vsyncpa [#allocation3], 1
    %s822 = scalar_lea.sflag [#allocation3], 1
    %823 = vsyncpa %s822, 1
    %824 = vsyncpa [#allocation6], 1
    %s825 = scalar_lea.sflag [#allocation6], 1
    %826 = vsyncpa %s825, 1
    %827 = vsyncpa [#allocation4], 1
    %s828 = scalar_lea.sflag [#allocation4], 1
    %829 = vsyncpa %s828, 1

</llo_original>
